<compile_context>
chip_gen: v7x
topology: tpu7x:2x2x1
jax: 0.10.0
libtpu: 0.0.40
codegen_flags: <defaults>
</compile_context>

<pallas_src>
import math

import jax
import jax.numpy as jnp
from jax.experimental import pallas as pl
from jax.experimental.pallas import tpu as pltpu


# ---------------------------------------------------------------------------
# Kernels
# ---------------------------------------------------------------------------
def _linear_bias_kernel(x_ref, w_ref, b_ref, o_ref):
    # Single K step (weight-resident or tk == K_pad): no accumulator scratch,
    # fused bias add, direct downcast store to the output tile.
    acc = jnp.dot(x_ref[...], w_ref[...], preferred_element_type=jnp.float32)
    o_ref[...] = (acc + b_ref[...]).astype(o_ref.dtype)


def _linear_acc_kernel(x_ref, w_ref, b_ref, o_ref, acc_ref):
    # Multi-step K reduction: f32 VMEM accumulator lives across the K axis.
    k = pl.program_id(2)

    @pl.when(k == 0)
    def _():
        acc_ref[...] = jnp.zeros_like(acc_ref)

    acc_ref[...] += jnp.dot(
        x_ref[...], w_ref[...], preferred_element_type=jnp.float32
    )

    @pl.when(k == pl.num_programs(2) - 1)
    def _():
        o_ref[...] = (acc_ref[...] + b_ref[...]).astype(o_ref.dtype)


# ---------------------------------------------------------------------------
# Helpers
# ---------------------------------------------------------------------------
def _round_up(x, m):
    return ((x + m - 1) // m) * m


def _pick_tile(dim, candidates):
    """Largest candidate that divides dim (dim is pre-padded to a mult. of 128)."""
    for t in candidates:
        if dim % t == 0:
            return t
    return dim


def _vmem_budget_bytes():
    """~75% of this generation's physical VMEM (48 MiB v7x, 96 MiB v5e/v6e)."""
    cap = 64 << 20  # conservative fallback (v7x per-TC capacity)
    try:
        info = pltpu.get_tpu_info()
        cap = int(getattr(info, "vmem_capacity_bytes", cap))
    except Exception:
        pass
    return (cap * 3) // 4


def _resident_need_bytes(tm, k_pad, n_pad, in_bytes, out_bytes):
    # Worst-case: weight, x tile and out tile all double-buffered + bias.
    return 2 * (
        (tm * k_pad + k_pad * n_pad) * in_bytes + n_pad * 4 + tm * n_pad * out_bytes
    )


# ---------------------------------------------------------------------------
# Wrapper
# ---------------------------------------------------------------------------
def linear_upsample(x, weight, bias, shorten_factor, *, mxu_dtype=None):
    """Pallas implementation of LinearUpsample.forward.

    Args:
      x:      (B, N, D)
      weight: (D*s, D)  -- PyTorch nn.Linear layout (out_features, in_features)
      bias:   (D*s,)
      shorten_factor: s
      mxu_dtype: optional MXU operand dtype (e.g. jnp.bfloat16); accumulation
        stays f32 and the output dtype matches x.  Not bit-matching vs f32.
    Returns:
      (B, N*s, D) in x.dtype
    """
    B, N, D = x.shape
    s = shorten_factor
    out_dim = D * s
    assert weight.shape == (out_dim, D), weight.shape
    assert bias.shape == (out_dim,), bias.shape

    M = B * N
    compute_dtype = mxu_dtype if mxu_dtype is not None else x.dtype
    in_bytes = jnp.dtype(compute_dtype).itemsize
    out_bytes = jnp.dtype(x.dtype).itemsize

    # One-time HBM prep (would be cached at param-init in a real model):
    # transpose weight to (K, N) and cast operands to the MXU dtype.
    x2d = x.reshape(M, D).astype(compute_dtype)
    wt = weight.T.astype(compute_dtype)                  # (D, out_dim) = (K, N)
    b2d = bias.reshape(1, out_dim).astype(jnp.float32)

    # Pad every GEMM dimension to a multiple of 128: lane-aligned tiles,
    # unmasked stores, full-height MXU pushes.  Padded rows/cols sliced off.
    m_pad = _round_up(M, 128)
    k_pad = _round_up(D, 128)
    n_pad = _round_up(out_dim, 128)
    if (m_pad, k_pad) != (M, D):
        x2d = jnp.pad(x2d, ((0, m_pad - M), (0, k_pad - D)))
    if (k_pad, n_pad) != (D, out_dim):
        wt = jnp.pad(wt, ((0, k_pad - D), (0, n_pad - out_dim)))
    if n_pad != out_dim:
        b2d = jnp.pad(b2d, ((0, 0), (0, n_pad - out_dim)))

    # M tile: never below 128; prefer >= 2 M-blocks so v7x's two TensorCores
    # both get work when M allows it.
    tm = _pick_tile(m_pad, (512, 256, 128))
    if m_pad // tm == 1 and m_pad >= 256:
        for cand in (256, 128):
            if m_pad % cand == 0 and m_pad // cand >= 2:
                tm = cand
                break

    budget = _vmem_budget_bytes()

    # Weight-resident fast path when it fits the per-generation VMEM budget.
    if _resident_need_bytes(tm, k_pad, n_pad, in_bytes, out_bytes) <= budget:
        tn, tk = n_pad, k_pad
    else:
        tn = _pick_tile(n_pad, (512, 256, 128))
        tk = _pick_tile(k_pad, (512, 256, 128))

    nm, nj, nk = m_pad // tm, n_pad // tn, k_pad // tk

    if nj == 1 and nk == 1:
        # Weight resident: constant index maps -> weight DMA'd once.
        grid = (nm,)
        in_specs = [
            pl.BlockSpec((tm, tk), lambda i: (i, 0)),
            pl.BlockSpec((tk, tn), lambda i: (0, 0)),
            pl.BlockSpec((1, tn), lambda i: (0, 0)),
        ]
        out_specs = pl.BlockSpec((tm, tn), lambda i: (i, 0))
        kernel = _linear_bias_kernel
        scratch = []
        dims = ("parallel",)
    elif nk == 1:
        # N tiled, single K step: still no accumulator scratch needed.
        grid = (nm, nj)
        in_specs = [
            pl.BlockSpec((tm, tk), lambda i, j: (i, 0)),
            pl.BlockSpec((tk, tn), lambda i, j: (0, j)),
            pl.BlockSpec((1, tn), lambda i, j: (0, j)),
        ]
        out_specs = pl.BlockSpec((tm, tn), lambda i, j: (i, j))
        kernel = _linear_bias_kernel
        scratch = []
        dims = ("parallel", "parallel")
    else:
        # Fully tiled (M, N, K) GEMM, K last, f32 accumulator scratch.
        grid = (nm, nj, nk)
        in_specs = [
            pl.BlockSpec((tm, tk), lambda i, j, k: (i, k)),
            pl.BlockSpec((tk, tn), lambda i, j, k: (k, j)),
            pl.BlockSpec((1, tn), lambda i, j, k: (0, j)),
        ]
        out_specs = pl.BlockSpec((tm, tn), lambda i, j, k: (i, j))
        kernel = _linear_acc_kernel
        scratch = [pltpu.VMEM((tm, tn), jnp.float32)]
        dims = ("parallel", "parallel", "arbitrary")

    # VMEM limit: actual double-buffered footprint (+ scratch) with headroom,
    # clamped to ~75% of this generation's physical VMEM.
    per_step = (tm * tk + tk * tn) * in_bytes + tn * 4 + tm * tn * out_bytes
    need = 2 * per_step + (tm * tn * 4 if scratch else 0)
    vmem_limit = int(min(budget, max(int(1.5 * need) + (1 << 20), 32 << 20)))

    # Advisory cost estimate reflecting actual HBM traffic incl. re-streams.
    w_passes = 1 if (nj == 1 and nk == 1) else nm
    x_passes = nj
    cost = pl.CostEstimate(
        flops=int(2 * m_pad * k_pad * n_pad),
        transcendentals=0,
        bytes_accessed=int(
            x_passes * m_pad * k_pad * in_bytes
            + w_passes * k_pad * n_pad * in_bytes
            + n_pad * 4
            + m_pad * n_pad * out_bytes
        ),
    )

    y_pad = pl.pallas_call(
        kernel,
        out_shape=jax.ShapeDtypeStruct((m_pad, n_pad), x.dtype),
        grid=grid,
        in_specs=in_specs,
        out_specs=out_specs,
        scratch_shapes=scratch,
        compiler_params=pltpu.CompilerParams(
            dimension_semantics=dims,
            vmem_limit_bytes=vmem_limit,
        ),
        cost_estimate=cost,
    )(x2d, wt, b2d)

    # Strip padding, then rearrange 'b n (s d) -> b (n s) d' (contiguous).
    y2d = y_pad[:M, :out_dim]
    return y2d.reshape(B, N, s, D).reshape(B, N * s, D)


# ---------------------------------------------------------------------------
# Pure-JAX reference (mirrors the PyTorch forward)
# ---------------------------------------------------------------------------
def _reference(x, weight, bias, shorten_factor):
    B, N, D = x.shape
    s = shorten_factor
    y = jnp.einsum("bnd,od->bno", x, weight) + bias  # (B, N, D*s)
    return y.reshape(B, N, s, D).reshape(B, N * s, D)


if __name__ == "__main__":
    # Small shapes consistent with the module: x is (batch, seq, dim).
    B, N, D = 2, 8, 32
    shorten_factor = 2
    out_dim = D * shorten_factor

    key = jax.random.PRNGKey(0)
    kx, kw, kb = jax.random.split(key, 3)

    x = jax.random.normal(kx, (B, N, D), dtype=jnp.float32)

    # Deterministic nn.Linear-style init: U(-1/sqrt(fan_in), 1/sqrt(fan_in)).
    bound = 1.0 / math.sqrt(D)
    weight = jax.random.uniform(kw, (out_dim, D), jnp.float32, -bound, bound)
    bias = jax.random.uniform(kb, (out_dim,), jnp.float32, -bound, bound)

    y_ref = _reference(x, weight, bias, shorten_factor)

    # Exact (f32 MXU operand) path.
    y = jax.block_until_ready(linear_upsample(x, weight, bias, shorten_factor))
    assert y.shape == (B, N * shorten_factor, D), y.shape
    assert jnp.allclose(y, y_ref, atol=1e-5, rtol=1e-5), "f32 mismatch vs reference"

    # Fast path: bf16 MXU operands, f32 accumulation (not bit-matching).
    y_bf16 = jax.block_until_ready(
        linear_upsample(x, weight, bias, shorten_factor, mxu_dtype=jnp.bfloat16)
    )
    assert y_bf16.shape == (B, N * shorten_factor, D), y_bf16.shape
    assert jnp.allclose(y_bf16, y_ref, atol=2e-2, rtol=2e-2), "bf16 mismatch vs reference"

    print("KERNEL_OK")
</pallas_src>

<mosaic_0001>
module attributes {stable_mosaic.version = 11 : i64} {
  func.func @_linear_bias_kernel(%arg0: i32, %arg1: memref<128x128xf32, #tpu.memory_space<vmem>>, %arg2: memref<128x128xf32, #tpu.memory_space<vmem>>, %arg3: memref<1x128xf32, #tpu.memory_space<vmem>>, %arg4: memref<128x128xf32, #tpu.memory_space<vmem>>) attributes {dimension_semantics = [#tpu.dimension_semantics<parallel>], iteration_bounds = array<i64: 1>, scalar_prefetch = 0 : i64, scratch_operands = 0 : i64, tpu.core_type = #tpu.core_type<tc>, window_params = [{transform_indices = @transform_0, window_bounds = array<i64: 128, 128>}, {pipeline_mode = #tpu.pipeline_mode<synchronous>, transform_indices = @transform_1, window_bounds = array<i64: 128, 128>}, {pipeline_mode = #tpu.pipeline_mode<synchronous>, transform_indices = @transform_2, window_bounds = array<i64: 1, 128>}, {transform_indices = @transform_3, window_bounds = array<i64: 128, 128>}]} {
    %c0 = arith.constant 0 : index
    %c0_0 = arith.constant 0 : index
    %0 = vector.load %arg1[%c0, %c0_0] : memref<128x128xf32, #tpu.memory_space<vmem>>, vector<128x128xf32>
    %c0_1 = arith.constant 0 : index
    %c0_2 = arith.constant 0 : index
    %1 = vector.load %arg2[%c0_1, %c0_2] : memref<128x128xf32, #tpu.memory_space<vmem>>, vector<128x128xf32>
    %cst = arith.constant dense<0.000000e+00> : vector<128x128xf32>
    %2 = tpu.matmul %0, %1, %cst {dimension_numbers = #tpu.dot_dimension_numbers<[1], [0], [0], [1], [0, 0, 1, 1], [], []>} : vector<128x128xf32>, vector<128x128xf32>, vector<128x128xf32> -> vector<128x128xf32>
    %c0_3 = arith.constant 0 : index
    %c0_4 = arith.constant 0 : index
    %3 = vector.load %arg3[%c0_3, %c0_4] : memref<1x128xf32, #tpu.memory_space<vmem>>, vector<1x128xf32>
    %4 = vector.broadcast %3 : vector<1x128xf32> to vector<128x128xf32>
    %5 = arith.addf %2, %4 : vector<128x128xf32>
    %c0_5 = arith.constant 0 : index
    %c0_6 = arith.constant 0 : index
    %6 = vector.load %arg4[%c0_5, %c0_6] : memref<128x128xf32, #tpu.memory_space<vmem>>, vector<128x128xf32>
    tpu.vector_store %arg4[%c0_5, %c0_6], %5 {strides = array<i32>} : memref<128x128xf32, #tpu.memory_space<vmem>>, vector<128x128xf32>,
    return
  }
  func.func @transform_0(%arg0: i32) -> (i32, i32) {
    %c0_i32 = arith.constant 0 : i32
    %c0_i32_0 = arith.constant 0 : i32
    return %arg0, %c0_i32 : i32, i32
  }
  func.func @transform_1(%arg0: i32) -> (i32, i32) {
    %c0_i32 = arith.constant 0 : i32
    %c0_i32_0 = arith.constant 0 : i32
    %c0_i32_1 = arith.constant 0 : i32
    return %c0_i32, %c0_i32_0 : i32, i32
  }
  func.func @transform_2(%arg0: i32) -> (i32, i32) {
    %c0_i32 = arith.constant 0 : i32
    %c0_i32_0 = arith.constant 0 : i32
    %c0_i32_1 = arith.constant 0 : i32
    return %c0_i32, %c0_i32_0 : i32, i32
  }
  func.func @transform_3(%arg0: i32) -> (i32, i32) {
    %c0_i32 = arith.constant 0 : i32
    %c0_i32_0 = arith.constant 0 : i32
    return %arg0, %c0_i32 : i32, i32
  }
}

</mosaic_0001>

<llo_original>
// kernel: tpu_custom_call.1
$region0: #{tpu_custom_call.1}
  #allocation0 [shape = 'u32[]', space=smem, size = 0x4, offset = 0x4, fixed_abs, tag = 'smem constant byte address 0x4 - core index']
  #allocation1 [shape = 'u32[144,128]{1,0:T(1,128)}', space=vmem, size = 0x12000, scoped, tag = 'internal scratch']
  %s0 = inlined_call_operand.hbm [shape: f32[128,128], index: 0, kind: input, shape index: {}]
  %s1 = inlined_call_operand.hbm [shape: f32[128,128], index: 1, kind: input, shape index: {}]
  %s2 = inlined_call_operand.vmem [shape: f32[1,128], index: 2, kind: input, shape index: {}]
  %s3 = inlined_call_operand.hbm [shape: f32[128,128], index: 3, kind: output, shape index: {}]
  %s4 = sld [smem:[#allocation0]]
  $region30: #{tpu_custom_call.1} parent=0
    _
  %s6 = ssub.s32 1, %s4
  %s7 = scalar_select 0, %s6, %s4
  $region1: #{tpu_custom_call.1} parent=0
    #allocation2 [shape = 'u8[65536]{0}', space=vmem, size = 0x10000, scoped, tag = 'input window, operand 0, single buffered']
    #allocation3 [shape = 's32[1]{0}', space=sflag, size = 0x4, scoped, tag = 'scoped memory for tpu_custom_call.1']
    #allocation4 [shape = 's32[1]{0}', space=sflag, size = 0x4, scoped, tag = 'scoped memory for tpu_custom_call.1']
    #allocation5 [shape = 'u8[65536]{0}', space=vmem, size = 0x10000, scoped, tag = 'input window, operand 1, single buffered']
    #allocation6 [shape = 's32[1]{0}', space=sflag, size = 0x4, scoped, tag = 'scoped memory for tpu_custom_call.1']
    #allocation7 [shape = 'u8[65536]{0}', space=vmem, size = 0x10000, scoped, tag = 'output window, operand 0, single buffered']
    %8 = vsyncpa [#allocation3], 0
    %9 = vsyncpa [#allocation6], 0
    %10 = vsyncpa [#allocation4], 0
    // Predicated region
    $region2: #{tpu_custom_call.1} parent=1 // pred_check
      _
    $region3: #{tpu_custom_call.1} parent=1 // pred_check_branch
      %12 = sbr.rel (0) target = $region5
    $region4: #{tpu_custom_call.1} parent=1 // pred_region
      %s14 = ssub.s32 2048, 2048
      %15 = vsyncadd [#allocation3], %s14
      %s16 = sshll.u32 [#allocation2], 4
      %s17 = int_to_ptr.vmem [resolvable:$true] %s16
      %22 = dma.hbm_to_vmem [thread:$0]  %s0, 2048, %s17, [#allocation3], 128, 128, 8
    $region5: #{tpu_custom_call.1} parent=1 // pred_fallthru
      _
    // Predicated region
    $region6: #{tpu_custom_call.1} parent=1 // pred_check
      _
    $region7: #{tpu_custom_call.1} parent=1 // pred_check_branch
      %24 = sbr.rel (0) target = $region9
    $region8: #{tpu_custom_call.1} parent=1 // pred_region
      %s26 = ssub.s32 2048, 2048
      %27 = vsyncadd [#allocation6], %s26
      %s28 = sshll.u32 [#allocation5], 4
      %s29 = int_to_ptr.vmem [resolvable:$true] %s28
      %34 = dma.hbm_to_vmem [thread:$0]  %s1, 2048, %s29, [#allocation6], 128, 128, 8
    $region9: #{tpu_custom_call.1} parent=1 // pred_fallthru
      _
    // Predicated region
    $region10: #{tpu_custom_call.1} parent=1 // pred_check
      _
    $region11: #{tpu_custom_call.1} parent=1 // pred_check_branch
      %36 = sbr.rel (0) target = $region13
    $region12: #{tpu_custom_call.1} parent=1 // pred_region
      _
    $region13: #{tpu_custom_call.1} parent=1 // pred_fallthru
      _
    // Predicated region
    $region14: #{tpu_custom_call.1} parent=1 // pred_check
      _
    $region15: #{tpu_custom_call.1} parent=1 // pred_check_branch
      %38 = sbr.rel (0) target = $region17
    $region16: #{tpu_custom_call.1} parent=1 // pred_region
      %39 = dma.done [#allocation3], 2048
    $region17: #{tpu_custom_call.1} parent=1 // pred_fallthru
      _
    // Predicated region
    $region18: #{tpu_custom_call.1} parent=1 // pred_check
      _
    $region19: #{tpu_custom_call.1} parent=1 // pred_check_branch
      %41 = sbr.rel (0) target = $region21
    $region20: #{tpu_custom_call.1} parent=1 // pred_region
      %42 = dma.done [#allocation6], 2048
    $region21: #{tpu_custom_call.1} parent=1 // pred_fallthru
      _
    %v43 = vld [vmem:[#allocation2] sm:$0xff]
    %v44 = vld [vmem:[#allocation2 + $0x8] sm:$0xff]
    %v45 = vld [vmem:[#allocation2 + $0x10] sm:$0xff]
    %v46 = vld [vmem:[#allocation2 + $0x18] sm:$0xff]
    %v47 = vld [vmem:[#allocation2 + $0x20] sm:$0xff]
    %v48 = vld [vmem:[#allocation2 + $0x28] sm:$0xff]
    %v49 = vld [vmem:[#allocation2 + $0x30] sm:$0xff]
    %v50 = vld [vmem:[#allocation2 + $0x38] sm:$0xff]
    %v51 = vld [vmem:[#allocation2 + $0x40] sm:$0xff]
    %v52 = vld [vmem:[#allocation2 + $0x48] sm:$0xff]
    %v53 = vld [vmem:[#allocation2 + $0x50] sm:$0xff]
    %v54 = vld [vmem:[#allocation2 + $0x58] sm:$0xff]
    %v55 = vld [vmem:[#allocation2 + $0x60] sm:$0xff]
    %v56 = vld [vmem:[#allocation2 + $0x68] sm:$0xff]
    %v57 = vld [vmem:[#allocation2 + $0x70] sm:$0xff]
    %v58 = vld [vmem:[#allocation2 + $0x78] sm:$0xff]
    %v59 = vld [vmem:[#allocation5] sm:$0xff]
    %v60 = vld [vmem:[#allocation5 + $0x8] sm:$0xff]
    %v61 = vld [vmem:[#allocation5 + $0x10] sm:$0xff]
    %v62 = vld [vmem:[#allocation5 + $0x18] sm:$0xff]
    %v63 = vld [vmem:[#allocation5 + $0x20] sm:$0xff]
    %v64 = vld [vmem:[#allocation5 + $0x28] sm:$0xff]
    %v65 = vld [vmem:[#allocation5 + $0x30] sm:$0xff]
    %v66 = vld [vmem:[#allocation5 + $0x38] sm:$0xff]
    %v67 = vld [vmem:[#allocation5 + $0x40] sm:$0xff]
    %v68 = vld [vmem:[#allocation5 + $0x48] sm:$0xff]
    %v69 = vld [vmem:[#allocation5 + $0x50] sm:$0xff]
    %v70 = vld [vmem:[#allocation5 + $0x58] sm:$0xff]
    %v71 = vld [vmem:[#allocation5 + $0x60] sm:$0xff]
    %v72 = vld [vmem:[#allocation5 + $0x68] sm:$0xff]
    %v73 = vld [vmem:[#allocation5 + $0x70] sm:$0xff]
    %v74 = vld [vmem:[#allocation5 + $0x78] sm:$0xff]
    %v75 = vld [vmem:[%s2] sm:$0x1]
    %v77 = vlaneseq
    %v78 = vshrl.u32 %v77, 7
    %v79 = vsub.s32 0, %v78
    %v80 = vrot.slane %v75, %v79
    %82 = vmatprep.subr.mxu0 0.0
    %83 = vmatpush1.msra.mxu0 %v59
    %84 = vmatprep.subr.mxu0 0.0
    %85 = vmatpush1.msra.mxu0 %v60
    %86 = vmatprep.subr.mxu0 0.0
    %87 = vmatpush1.msra.mxu0 %v61
    %88 = vmatprep.subr.mxu0 0.0
    %89 = vmatpush1.msra.mxu0 %v62
    %90 = vmatprep.subr.mxu0 0.0
    %91 = vmatpush1.msra.mxu0 %v63
    %92 = vmatprep.subr.mxu0 0.0
    %93 = vmatpush1.msra.mxu0 %v64
    %94 = vmatprep.subr.mxu0 0.0
    %95 = vmatpush1.msra.mxu0 %v65
    %96 = vmatprep.subr.mxu0 0.0
    %97 = vmatpush1.msra.mxu0 %v66
    %98 = vmatprep.subr.mxu0 0.0
    %99 = vmatpush1.msra.mxu0 %v67
    %100 = vmatprep.subr.mxu0 0.0
    %101 = vmatpush1.msra.mxu0 %v68
    %102 = vmatprep.subr.mxu0 0.0
    %103 = vmatpush1.msra.mxu0 %v69
    %104 = vmatprep.subr.mxu0 0.0
    %105 = vmatpush1.msra.mxu0 %v70
    %106 = vmatprep.subr.mxu0 0.0
    %107 = vmatpush1.msra.mxu0 %v71
    %108 = vmatprep.subr.mxu0 0.0
    %109 = vmatpush1.msra.mxu0 %v72
    %110 = vmatprep.subr.mxu0 0.0
    %111 = vmatpush1.msra.mxu0 %v73
    %112 = vmatprep.subr.mxu0 0.0
    %113 = vmatpush1.msra.mxu0 %v74
    %114 = vmatprep.subr.mxu0 0.0
    %115 = vmatpush1.msra.mxu0 0.0
    %116 = vmatprep.subr.mxu0 0.0
    %117 = vmatpush1.msra.mxu0 0.0
    %118 = vmatprep.subr.mxu0 0.0
    %119 = vmatpush1.msra.mxu0 0.0
    %120 = vmatprep.subr.mxu0 0.0
    %121 = vmatpush1.msra.mxu0 0.0
    %122 = vmatprep.subr.mxu0 0.0
    %123 = vmatpush1.msra.mxu0 0.0
    %124 = vmatprep.subr.mxu0 0.0
    %125 = vmatpush1.msra.mxu0 0.0
    %126 = vmatprep.subr.mxu0 0.0
    %127 = vmatpush1.msra.mxu0 0.0
    %128 = vmatprep.subr.mxu0 0.0
    %129 = vmatpush1.msra.mxu0 0.0
    %130 = vmatprep.subr.mxu0 0.0
    %131 = vmatpush1.msra.mxu0 0.0
    %132 = vmatprep.subr.mxu0 0.0
    %133 = vmatpush1.msra.mxu0 0.0
    %134 = vmatprep.subr.mxu0 0.0
    %135 = vmatpush1.msra.mxu0 0.0
    %136 = vmatprep.subr.mxu0 0.0
    %137 = vmatpush1.msra.mxu0 0.0
    %138 = vmatprep.subr.mxu0 0.0
    %139 = vmatpush1.msra.mxu0 0.0
    %140 = vmatprep.subr.mxu0 0.0
    %141 = vmatpush1.msra.mxu0 0.0
    %142 = vmatprep.subr.mxu0 0.0
    %143 = vmatpush1.msra.mxu0 0.0
    %144 = vmatprep.subr.mxu0 0.0
    %145 = vmatpush1.msra.mxu0 0.0
    %146 = vmatprep.mubr.f32.mxu0 0.0
    %147 = vmatmul.mubr.f32.gmra.mrb[0].mxu0 %v43
    %v148 = vpop.f32.mrb[0].mxu0
    %v149 = vadd.f32 %v80, %v148
    %v150 = vpop.f32.mrb[0].mxu0
    %151 = vmatprep.mubr.f32.mxu0 0.0
    %152 = vmatmul.mubr.f32.gmra.mrb[0].mxu0 %v44
    %v153 = vpop.f32.mrb[0].mxu0
    %v154 = vadd.f32 %v80, %v153
    %v155 = vpop.f32.mrb[0].mxu0
    %156 = vmatprep.mubr.f32.mxu0 0.0
    %157 = vmatmul.mubr.f32.gmra.mrb[0].mxu0 %v45
    %v158 = vpop.f32.mrb[0].mxu0
    %v159 = vadd.f32 %v80, %v158
    %v160 = vpop.f32.mrb[0].mxu0
    %161 = vmatprep.mubr.f32.mxu0 0.0
    %162 = vmatmul.mubr.f32.gmra.mrb[0].mxu0 %v46
    %v163 = vpop.f32.mrb[0].mxu0
    %v164 = vadd.f32 %v80, %v163
    %v165 = vpop.f32.mrb[0].mxu0
    %166 = vmatprep.mubr.f32.mxu0 0.0
    %167 = vmatmul.mubr.f32.gmra.mrb[0].mxu0 %v47
    %v168 = vpop.f32.mrb[0].mxu0
    %v169 = vadd.f32 %v80, %v168
    %v170 = vpop.f32.mrb[0].mxu0
    %171 = vmatprep.mubr.f32.mxu0 0.0
    %172 = vmatmul.mubr.f32.gmra.mrb[0].mxu0 %v48
    %v173 = vpop.f32.mrb[0].mxu0
    %v174 = vadd.f32 %v80, %v173
    %v175 = vpop.f32.mrb[0].mxu0
    %176 = vmatprep.mubr.f32.mxu0 0.0
    %177 = vmatmul.mubr.f32.gmra.mrb[0].mxu0 %v49
    %v178 = vpop.f32.mrb[0].mxu0
    %v179 = vadd.f32 %v80, %v178
    %v180 = vpop.f32.mrb[0].mxu0
    %181 = vmatprep.mubr.f32.mxu0 0.0
    %182 = vmatmul.mubr.f32.gmra.mrb[0].mxu0 %v50
    %v183 = vpop.f32.mrb[0].mxu0
    %v184 = vadd.f32 %v80, %v183
    %v185 = vpop.f32.mrb[0].mxu0
    %186 = vmatprep.mubr.f32.mxu0 0.0
    %187 = vmatmul.mubr.f32.gmra.mrb[0].mxu0 %v51
    %v188 = vpop.f32.mrb[0].mxu0
    %v189 = vadd.f32 %v80, %v188
    %v190 = vpop.f32.mrb[0].mxu0
    %191 = vmatprep.mubr.f32.mxu0 0.0
    %192 = vmatmul.mubr.f32.gmra.mrb[0].mxu0 %v52
    %v193 = vpop.f32.mrb[0].mxu0
    %v194 = vadd.f32 %v80, %v193
    %v195 = vpop.f32.mrb[0].mxu0
    %196 = vmatprep.mubr.f32.mxu0 0.0
    %197 = vmatmul.mubr.f32.gmra.mrb[0].mxu0 %v53
    %v198 = vpop.f32.mrb[0].mxu0
    %v199 = vadd.f32 %v80, %v198
    %v200 = vpop.f32.mrb[0].mxu0
    %201 = vmatprep.mubr.f32.mxu0 0.0
    %202 = vmatmul.mubr.f32.gmra.mrb[0].mxu0 %v54
    %v203 = vpop.f32.mrb[0].mxu0
    %v204 = vadd.f32 %v80, %v203
    %v205 = vpop.f32.mrb[0].mxu0
    %206 = vmatprep.mubr.f32.mxu0 0.0
    %207 = vmatmul.mubr.f32.gmra.mrb[0].mxu0 %v55
    %v208 = vpop.f32.mrb[0].mxu0
    %v209 = vadd.f32 %v80, %v208
    %v210 = vpop.f32.mrb[0].mxu0
    %211 = vmatprep.mubr.f32.mxu0 0.0
    %212 = vmatmul.mubr.f32.gmra.mrb[0].mxu0 %v56
    %v213 = vpop.f32.mrb[0].mxu0
    %v214 = vadd.f32 %v80, %v213
    %v215 = vpop.f32.mrb[0].mxu0
    %216 = vmatprep.mubr.f32.mxu0 0.0
    %217 = vmatmul.mubr.f32.gmra.mrb[0].mxu0 %v57
    %v218 = vpop.f32.mrb[0].mxu0
    %v219 = vadd.f32 %v80, %v218
    %v220 = vpop.f32.mrb[0].mxu0
    %221 = vmatprep.mubr.f32.mxu0 0.0
    %222 = vmatmul.mubr.f32.gmra.mrb[0].mxu0 %v58
    %v223 = vpop.f32.mrb[0].mxu0
    %v224 = vadd.f32 %v80, %v223
    %v225 = vpop.f32.mrb[0].mxu0
    %226 = vdwg.mxu0
    %227 = vst [vmem:[#allocation7] sm:$0xff] %v149
    %228 = vst [vmem:[#allocation7 + $0x8] sm:$0xff] %v154
    %229 = vst [vmem:[#allocation7 + $0x10] sm:$0xff] %v159
    %230 = vst [vmem:[#allocation7 + $0x18] sm:$0xff] %v164
    %231 = vst [vmem:[#allocation7 + $0x20] sm:$0xff] %v169
    %232 = vst [vmem:[#allocation7 + $0x28] sm:$0xff] %v174
    %233 = vst [vmem:[#allocation7 + $0x30] sm:$0xff] %v179
    %234 = vst [vmem:[#allocation7 + $0x38] sm:$0xff] %v184
    %235 = vst [vmem:[#allocation7 + $0x40] sm:$0xff] %v189
    %236 = vst [vmem:[#allocation7 + $0x48] sm:$0xff] %v194
    %237 = vst [vmem:[#allocation7 + $0x50] sm:$0xff] %v199
    %238 = vst [vmem:[#allocation7 + $0x58] sm:$0xff] %v204
    %239 = vst [vmem:[#allocation7 + $0x60] sm:$0xff] %v209
    %240 = vst [vmem:[#allocation7 + $0x68] sm:$0xff] %v214
    %241 = vst [vmem:[#allocation7 + $0x70] sm:$0xff] %v219
    %242 = vst [vmem:[#allocation7 + $0x78] sm:$0xff] %v224
    // Predicated region
    $region22: #{tpu_custom_call.1} parent=1 // pred_check
      _
    $region23: #{tpu_custom_call.1} parent=1 // pred_check_branch
      %244 = sbr.rel (0) target = $region25
    $region24: #{tpu_custom_call.1} parent=1 // pred_region
      %s246 = ssub.s32 2048, 2048
      %247 = vsyncadd [#allocation4], %s246
      %s248 = sshll.u32 [#allocation7], 4
      %s249 = int_to_ptr.vmem [resolvable:$true] %s248
      %254 = dma.vmem_to_hbm [thread:$0]  %s249, 2048, %s3, [#allocation4], 128, 128, 8
    $region25: #{tpu_custom_call.1} parent=1 // pred_fallthru
      _
    // Predicated region
    $region26: #{tpu_custom_call.1} parent=1 // pred_check
      _
    $region27: #{tpu_custom_call.1} parent=1 // pred_check_branch
      %256 = sbr.rel (0) target = $region29
    $region28: #{tpu_custom_call.1} parent=1 // pred_region
      %257 = dma.done [#allocation4], 2048
    $region29: #{tpu_custom_call.1} parent=1 // pred_fallthru
      _
    %258 = vsyncpa [#allocation3], 1
    %259 = vsyncpa [#allocation6], 1
    %260 = vsyncpa [#allocation4], 1

</llo_original>
